<compile_context>
chip_gen: v6e
topology: v6e:2x2x1
jax: 0.10.0
libtpu: 0.0.40
codegen_flags: <defaults>
</compile_context>

<pallas_src>
import math

import jax
import jax.numpy as jnp
from jax.experimental import pallas as pl
from jax.experimental.pallas import tpu as pltpu

TWO_PI = 2.0 * math.pi


def _round_up(x, m):
    return ((x + m - 1) // m) * m


# ---------------------------------------------------------------------------
# Fused Pallas kernel: all layers (+ folded final scale) in one pass
# ---------------------------------------------------------------------------
def _make_fused_kernel(num_layers):
    """Builds a kernel taking (x_ref, p_0..p_{L-1}, m_0..m_{L-1}, o_ref).

    x_ref: (TM, Kpad_0)      f32  activation tile (batch block)
    p_l:   (8, Kpad_l)       f32  packed params; rows 0=alpha 1=beta
                                  2=2*pi*gamma 3=delta 4=kappa/(2*pi)
    m_l:   (Kpad_l, Npad_l)  f32/bf16  zero-padded mask (last one has the
                                  per-channel `linear` scale folded in)
    o_ref: (TM, Npad_last)   f32
    """

    def kernel(*refs):
        x_ref = refs[0]
        p_refs = refs[1:1 + num_layers]
        m_refs = refs[1 + num_layers:1 + 2 * num_layers]
        o_ref = refs[-1]

        h = x_ref[...]                                   # (TM, Kpad_0), f32
        for l in range(num_layers):                      # static unroll (small L)
            p = p_refs[l][...]                           # (8, Kpad_l)
            a = p[0:1, :]
            b = p[1:2, :]
            g = p[2:3, :]                                # already 2*pi*gamma
            d = p[3:4, :]
            k = p[4:5, :]                                # already kappa/(2*pi)
            # Elementwise harmonic features in f32 (VPU + EUP for sin).
            updated = a * h + b + k * jnp.sin(g * h + d)
            mask = m_refs[l][...]                        # (Kpad_l, Npad_l)
            # MXU matmul; bf16 (or f32) inputs, always f32 accumulation.
            h = jnp.dot(updated.astype(mask.dtype), mask,
                        preferred_element_type=jnp.float32)
        o_ref[...] = h

    return kernel


# ---------------------------------------------------------------------------
# Host-side packing (per-layer lane-dense padding, folded constants)
# ---------------------------------------------------------------------------
def pack_for_kernel(layer_params, linear, matmul_dtype):
    """Per-layer zero-padded, sublane-packed params and masks."""
    num_layers = len(layer_params)
    params_list, masks_list = [], []
    for l, (a, b, g, d, k, mask) in enumerate(layer_params):
        din, dout = mask.shape
        kpad = _round_up(din, 128)
        npad = _round_up(dout, 128)

        p = jnp.zeros((8, kpad), jnp.float32)
        p = p.at[0, :din].set(a)
        p = p.at[1, :din].set(b)
        p = p.at[2, :din].set(TWO_PI * g)                # fold 2*pi at pack time
        p = p.at[3, :din].set(d)
        p = p.at[4, :din].set(k / TWO_PI)                # fold 1/(2*pi)

        m = jnp.zeros((kpad, npad), jnp.float32).at[:din, :dout].set(mask)
        if l == num_layers - 1 and linear is not None:
            # Fold the final per-channel scale into the last mask's columns.
            m = m.at[:, :dout].multiply(linear)

        params_list.append(p)
        masks_list.append(m.astype(matmul_dtype))
    return params_list, masks_list


# ---------------------------------------------------------------------------
# pallas_call wrapper
# ---------------------------------------------------------------------------
def multilayer_harmonic_forward(x, layer_params, linear, *,
                                matmul_dtype=jnp.bfloat16, block_m=256):
    """x: (B, Din) f32 -> (B, output_size) f32. Single fused pallas_call."""
    B, Din = x.shape
    num_layers = len(layer_params)
    output_size = layer_params[-1][5].shape[1]

    params_list, masks_list = pack_for_kernel(layer_params, linear, matmul_dtype)
    kpad0 = params_list[0].shape[1]
    npad_out = masks_list[-1].shape[1]

    # Batch tiling: multiple of 8; ensure >= 2 grid steps where possible so
    # both v7x TensorCores receive work under dimension_semantics=("parallel",).
    tm = min(block_m, _round_up(B, 8))
    b_pad = _round_up(B, tm)
    if b_pad // tm < 2 and b_pad >= 16:
        tm = _round_up((b_pad + 1) // 2, 8)
        b_pad = _round_up(b_pad, tm)
    grid = (b_pad // tm,)

    x_pad = jnp.zeros((b_pad, kpad0), jnp.float32).at[:B, :Din].set(x)

    # VMEM budget: double-buffered activation tiles, single-buffered params /
    # masks, plus headroom for unrolled-layer intermediates and Mosaic scratch.
    mm_bytes = jnp.dtype(matmul_dtype).itemsize
    max_w = max(max(m.shape) for m in masks_list)
    est = (2 * tm * kpad0 * 4 + 2 * tm * npad_out * 4
           + sum(p.size * 4 for p in params_list)
           + sum(m.size * mm_bytes for m in masks_list)
           + 6 * tm * max_w * 4)
    try:
        vmem_cap = int(pltpu.get_tpu_info().vmem_capacity_bytes)
    except Exception:
        vmem_cap = 64 << 20           # assume the smallest generation (v7x/TC)
    vmem_cap = max(vmem_cap - (12 << 20), 32 << 20)       # leave Mosaic headroom
    vmem_limit = int(min(max(est + (8 << 20), 32 << 20), vmem_cap))

    kernel = _make_fused_kernel(num_layers)
    out_shape = jax.ShapeDtypeStruct((b_pad, npad_out), jnp.float32)

    def run(single_buffer_invariants):
        def inv_spec(shape):
            if single_buffer_invariants:
                return pl.BlockSpec(shape, lambda i: (0, 0),
                                    pipeline_mode=pl.Buffered(1))
            return pl.BlockSpec(shape, lambda i: (0, 0))

        in_specs = [pl.BlockSpec((tm, kpad0), lambda i: (i, 0))]
        in_specs += [inv_spec(p.shape) for p in params_list]
        in_specs += [inv_spec(m.shape) for m in masks_list]

        return pl.pallas_call(
            kernel,
            out_shape=out_shape,
            grid_spec=pltpu.PrefetchScalarGridSpec(
                num_scalar_prefetch=0,
                grid=grid,
                in_specs=in_specs,
                out_specs=pl.BlockSpec((tm, npad_out), lambda i: (i, 0)),
            ),
            compiler_params=pltpu.CompilerParams(
                dimension_semantics=("parallel",),
                vmem_limit_bytes=vmem_limit,
            ),
        )(x_pad, *params_list, *masks_list)

    try:
        out = run(True)
    except Exception:
        # Fallback for JAX versions without pipeline_mode / Buffered support.
        out = run(False)

    return out[:B, :output_size]


# ---------------------------------------------------------------------------
# Parameter construction (deterministic, mimics torch.rand -> U[0,1))
# ---------------------------------------------------------------------------
def init_harmonic_params(key, in_size, out_size):
    ks = jax.random.split(key, 6)
    alphas = jax.random.uniform(ks[0], (in_size,), jnp.float32)
    betas = jax.random.uniform(ks[1], (in_size,), jnp.float32)
    kappas = jax.random.uniform(ks[2], (in_size,), jnp.float32)
    gammas = jax.random.uniform(ks[3], (in_size,), jnp.float32)
    deltas = jax.random.uniform(ks[4], (in_size,), jnp.float32)
    mask = jax.random.uniform(ks[5], (in_size, out_size), jnp.float32)
    return (alphas, betas, gammas, deltas, kappas, mask)


def init_multilayer(key, input_size, output_size, layers=None):
    params = []
    if layers is None:
        key, sub = jax.random.split(key)
        params.append(init_harmonic_params(sub, input_size, output_size))
    else:
        key, sub = jax.random.split(key)
        params.append(init_harmonic_params(sub, input_size, layers[0]))
        for i, l in enumerate(layers[:-1]):
            key, sub = jax.random.split(key)
            params.append(init_harmonic_params(sub, l, layers[i + 1]))
        key, sub = jax.random.split(key)
        params.append(init_harmonic_params(sub, layers[-1], output_size))
    if output_size == 1:
        linear = None
    else:
        key, sub = jax.random.split(key)
        linear = jax.random.uniform(sub, (output_size,), jnp.float32)
    return params, linear


# ---------------------------------------------------------------------------
# Pure-JAX reference (unfolded parameters) for correctness check
# ---------------------------------------------------------------------------
def reference_forward(x, layer_params, linear):
    for (a, b, g, d, k, mask) in layer_params:
        updated = a * x + b + (k / TWO_PI) * jnp.sin(TWO_PI * g * x + d)
        x = updated @ mask
    if linear is not None:
        x = x * linear
    return x


if __name__ == "__main__":
    key = jax.random.PRNGKey(0)
    k_inA, k_pA, k_inB, k_pB, k_inC, k_pC = jax.random.split(key, 6)

    # --- Config A: 16 -> 32 -> 8, batch 8 (small homogeneous widths) --------
    xA = jax.random.uniform(k_inA, (8, 16), jnp.float32)
    paramsA, linearA = init_multilayer(k_pA, 16, 8, layers=[32])
    refA = reference_forward(xA, paramsA, linearA)

    outA_f32 = jax.block_until_ready(
        multilayer_harmonic_forward(xA, paramsA, linearA,
                                    matmul_dtype=jnp.float32))
    assert outA_f32.shape == (8, 8)
    assert jnp.allclose(outA_f32, refA, rtol=1e-4, atol=1e-4), "A f32 mismatch"

    # Default path: bf16 masks / bf16-in f32-acc MXU (accuracy mode, not
    # bit-equivalence with the f64 torch reference).
    outA_bf16 = jax.block_until_ready(
        multilayer_harmonic_forward(xA, paramsA, linearA))
    assert outA_bf16.shape == (8, 8)
    assert bool(jnp.all(jnp.isfinite(outA_bf16)))
    assert jnp.allclose(outA_bf16, refA, rtol=1e-1, atol=1e-1), "A bf16 mismatch"

    # --- Config B: 16 -> 256 -> 8, batch 48 (heterogeneous per-layer padding,
    #     folded linear, 2 grid steps) ----------------------------------------
    xB = jax.random.uniform(k_inB, (48, 16), jnp.float32)
    paramsB, linearB = init_multilayer(k_pB, 16, 8, layers=[256])
    refB = reference_forward(xB, paramsB, linearB)
    outB = jax.block_until_ready(
        multilayer_harmonic_forward(xB, paramsB, linearB,
                                    matmul_dtype=jnp.float32))
    assert outB.shape == (48, 8)
    assert jnp.allclose(outB, refB, rtol=1e-4, atol=1e-2), "B f32 mismatch"

    # --- Config C: output_size == 1 (no final linear scale), single layer ---
    xC = jax.random.uniform(k_inC, (8, 16), jnp.float32)
    paramsC, linearC = init_multilayer(k_pC, 16, 1, layers=None)
    assert linearC is None
    refC = reference_forward(xC, paramsC, linearC)
    outC = jax.block_until_ready(
        multilayer_harmonic_forward(xC, paramsC, linearC,
                                    matmul_dtype=jnp.float32))
    assert outC.shape == (8, 1)
    assert jnp.allclose(outC, refC, rtol=1e-4, atol=1e-4), "C f32 mismatch"

    print("KERNEL_OK")
</pallas_src>

<mosaic_0001>
module attributes {stable_mosaic.version = 11 : i64} {
  func.func @kernel(%arg0: i32, %arg1: memref<8x128xf32, #tpu.memory_space<vmem>>, %arg2: memref<8x128xf32, #tpu.memory_space<vmem>>, %arg3: memref<8x128xf32, #tpu.memory_space<vmem>>, %arg4: memref<128x128xf32, #tpu.memory_space<vmem>>, %arg5: memref<128x128xf32, #tpu.memory_space<vmem>>, %arg6: memref<8x128xf32, #tpu.memory_space<vmem>>) attributes {dimension_semantics = [#tpu.dimension_semantics<parallel>], iteration_bounds = array<i64: 1>, scalar_prefetch = 0 : i64, scratch_operands = 0 : i64, tpu.core_type = #tpu.core_type<tc>, window_params = [{transform_indices = @transform_0, window_bounds = array<i64: 8, 128>}, {pipeline_mode = #tpu.pipeline_mode<synchronous>, transform_indices = @transform_1, window_bounds = array<i64: 8, 128>}, {pipeline_mode = #tpu.pipeline_mode<synchronous>, transform_indices = @transform_2, window_bounds = array<i64: 8, 128>}, {pipeline_mode = #tpu.pipeline_mode<synchronous>, transform_indices = @transform_3, window_bounds = array<i64: 128, 128>}, {pipeline_mode = #tpu.pipeline_mode<synchronous>, transform_indices = @transform_4, window_bounds = array<i64: 128, 128>}, {transform_indices = @transform_5, window_bounds = array<i64: 8, 128>}]} {
    %c0 = arith.constant 0 : index
    %c0_0 = arith.constant 0 : index
    %0 = vector.load %arg1[%c0, %c0_0] : memref<8x128xf32, #tpu.memory_space<vmem>>, vector<8x128xf32>
    %c0_1 = arith.constant 0 : index
    %c0_2 = arith.constant 0 : index
    %1 = vector.load %arg2[%c0_1, %c0_2] : memref<8x128xf32, #tpu.memory_space<vmem>>, vector<8x128xf32>
    %2 = vector.extract_strided_slice %1 {offsets = [0, 0], sizes = [1, 128], strides = [1, 1]} : vector<8x128xf32> to vector<1x128xf32>
    %3 = vector.extract_strided_slice %1 {offsets = [1, 0], sizes = [1, 128], strides = [1, 1]} : vector<8x128xf32> to vector<1x128xf32>
    %4 = vector.extract_strided_slice %1 {offsets = [2, 0], sizes = [1, 128], strides = [1, 1]} : vector<8x128xf32> to vector<1x128xf32>
    %5 = vector.extract_strided_slice %1 {offsets = [3, 0], sizes = [1, 128], strides = [1, 1]} : vector<8x128xf32> to vector<1x128xf32>
    %6 = vector.extract_strided_slice %1 {offsets = [4, 0], sizes = [1, 128], strides = [1, 1]} : vector<8x128xf32> to vector<1x128xf32>
    %7 = vector.broadcast %2 : vector<1x128xf32> to vector<8x128xf32>
    %8 = arith.mulf %7, %0 : vector<8x128xf32>
    %9 = vector.broadcast %3 : vector<1x128xf32> to vector<8x128xf32>
    %10 = arith.addf %8, %9 : vector<8x128xf32>
    %11 = vector.broadcast %4 : vector<1x128xf32> to vector<8x128xf32>
    %12 = arith.mulf %11, %0 : vector<8x128xf32>
    %13 = vector.broadcast %5 : vector<1x128xf32> to vector<8x128xf32>
    %14 = arith.addf %12, %13 : vector<8x128xf32>
    %15 = math.sin %14 : vector<8x128xf32>
    %16 = vector.broadcast %6 : vector<1x128xf32> to vector<8x128xf32>
    %17 = arith.mulf %16, %15 : vector<8x128xf32>
    %18 = arith.addf %10, %17 : vector<8x128xf32>
    %c0_3 = arith.constant 0 : index
    %c0_4 = arith.constant 0 : index
    %19 = vector.load %arg4[%c0_3, %c0_4] : memref<128x128xf32, #tpu.memory_space<vmem>>, vector<128x128xf32>
    %cst = arith.constant dense<0.000000e+00> : vector<8x128xf32>
    %20 = tpu.matmul %18, %19, %cst {dimension_numbers = #tpu.dot_dimension_numbers<[1], [0], [0], [1], [0, 0, 1, 1], [], []>} : vector<8x128xf32>, vector<128x128xf32>, vector<8x128xf32> -> vector<8x128xf32>
    %c0_5 = arith.constant 0 : index
    %c0_6 = arith.constant 0 : index
    %21 = vector.load %arg3[%c0_5, %c0_6] : memref<8x128xf32, #tpu.memory_space<vmem>>, vector<8x128xf32>
    %22 = vector.extract_strided_slice %21 {offsets = [0, 0], sizes = [1, 128], strides = [1, 1]} : vector<8x128xf32> to vector<1x128xf32>
    %23 = vector.extract_strided_slice %21 {offsets = [1, 0], sizes = [1, 128], strides = [1, 1]} : vector<8x128xf32> to vector<1x128xf32>
    %24 = vector.extract_strided_slice %21 {offsets = [2, 0], sizes = [1, 128], strides = [1, 1]} : vector<8x128xf32> to vector<1x128xf32>
    %25 = vector.extract_strided_slice %21 {offsets = [3, 0], sizes = [1, 128], strides = [1, 1]} : vector<8x128xf32> to vector<1x128xf32>
    %26 = vector.extract_strided_slice %21 {offsets = [4, 0], sizes = [1, 128], strides = [1, 1]} : vector<8x128xf32> to vector<1x128xf32>
    %27 = vector.broadcast %22 : vector<1x128xf32> to vector<8x128xf32>
    %28 = arith.mulf %27, %20 : vector<8x128xf32>
    %29 = vector.broadcast %23 : vector<1x128xf32> to vector<8x128xf32>
    %30 = arith.addf %28, %29 : vector<8x128xf32>
    %31 = vector.broadcast %24 : vector<1x128xf32> to vector<8x128xf32>
    %32 = arith.mulf %31, %20 : vector<8x128xf32>
    %33 = vector.broadcast %25 : vector<1x128xf32> to vector<8x128xf32>
    %34 = arith.addf %32, %33 : vector<8x128xf32>
    %35 = math.sin %34 : vector<8x128xf32>
    %36 = vector.broadcast %26 : vector<1x128xf32> to vector<8x128xf32>
    %37 = arith.mulf %36, %35 : vector<8x128xf32>
    %38 = arith.addf %30, %37 : vector<8x128xf32>
    %c0_7 = arith.constant 0 : index
    %c0_8 = arith.constant 0 : index
    %39 = vector.load %arg5[%c0_7, %c0_8] : memref<128x128xf32, #tpu.memory_space<vmem>>, vector<128x128xf32>
    %cst_9 = arith.constant dense<0.000000e+00> : vector<8x128xf32>
    %40 = tpu.matmul %38, %39, %cst_9 {dimension_numbers = #tpu.dot_dimension_numbers<[1], [0], [0], [1], [0, 0, 1, 1], [], []>} : vector<8x128xf32>, vector<128x128xf32>, vector<8x128xf32> -> vector<8x128xf32>
    %c0_10 = arith.constant 0 : index
    %c0_11 = arith.constant 0 : index
    %41 = vector.load %arg6[%c0_10, %c0_11] : memref<8x128xf32, #tpu.memory_space<vmem>>, vector<8x128xf32>
    tpu.vector_store %arg6[%c0_10, %c0_11], %40 {strides = array<i32>} : memref<8x128xf32, #tpu.memory_space<vmem>>, vector<8x128xf32>,
    return
  }
  func.func @transform_0(%arg0: i32) -> (i32, i32) {
    %c0_i32 = arith.constant 0 : i32
    %c0_i32_0 = arith.constant 0 : i32
    return %arg0, %c0_i32 : i32, i32
  }
  func.func @transform_1(%arg0: i32) -> (i32, i32) {
    %c0_i32 = arith.constant 0 : i32
    %c0_i32_0 = arith.constant 0 : i32
    %c0_i32_1 = arith.constant 0 : i32
    return %c0_i32, %c0_i32_0 : i32, i32
  }
  func.func @transform_2(%arg0: i32) -> (i32, i32) {
    %c0_i32 = arith.constant 0 : i32
    %c0_i32_0 = arith.constant 0 : i32
    %c0_i32_1 = arith.constant 0 : i32
    return %c0_i32, %c0_i32_0 : i32, i32
  }
  func.func @transform_3(%arg0: i32) -> (i32, i32) {
    %c0_i32 = arith.constant 0 : i32
    %c0_i32_0 = arith.constant 0 : i32
    %c0_i32_1 = arith.constant 0 : i32
    return %c0_i32, %c0_i32_0 : i32, i32
  }
  func.func @transform_4(%arg0: i32) -> (i32, i32) {
    %c0_i32 = arith.constant 0 : i32
    %c0_i32_0 = arith.constant 0 : i32
    %c0_i32_1 = arith.constant 0 : i32
    return %c0_i32, %c0_i32_0 : i32, i32
  }
  func.func @transform_5(%arg0: i32) -> (i32, i32) {
    %c0_i32 = arith.constant 0 : i32
    %c0_i32_0 = arith.constant 0 : i32
    return %arg0, %c0_i32 : i32, i32
  }
}

module attributes {stable_mosaic.version = 11 : i64} {
  func.func @kernel(%arg0: i32, %arg1: memref<8x128xf32, #tpu.memory_space<vmem>>, %arg2: memref<8x128xf32, #tpu.memory_space<vmem>>, %arg3: memref<8x128xf32, #tpu.memory_space<vmem>>, %arg4: memref<128x128xf32, #tpu.memory_space<vmem>>, %arg5: memref<128x128xf32, #tpu.memory_space<vmem>>, %arg6: memref<8x128xf32, #tpu.memory_space<vmem>>) attributes {dimension_semantics = [#tpu.dimension_semantics<parallel>], iteration_bounds = array<i64: 1>, scalar_prefetch = 0 : i64, scratch_operands = 0 : i64, tpu.core_type = #tpu.core_type<tc>, window_params = [{transform_indices = @transform_0, window_bounds = array<i64: 8, 128>}, {pipeline_mode = #tpu.pipeline_mode<synchronous>, transform_indices = @transform_1, window_bounds = array<i64: 8, 128>}, {pipeline_mode = #tpu.pipeline_mode<synchronous>, transform_indices = @transform_2, window_bounds = array<i64: 8, 128>}, {pipeline_mode = #tpu.pipeline_mode<synchronous>, transform_indices = @transform_3, window_bounds = array<i64: 128, 128>}, {pipeline_mode = #tpu.pipeline_mode<synchronous>, transform_indices = @transform_4, window_bounds = array<i64: 128, 128>}, {transform_indices = @transform_5, window_bounds = array<i64: 8, 128>}]} {
    %c0 = arith.constant 0 : index
    %c0_0 = arith.constant 0 : index
    %0 = vector.load %arg1[%c0, %c0_0] : memref<8x128xf32, #tpu.memory_space<vmem>>, vector<8x128xf32>
    %c0_1 = arith.constant 0 : index
    %c0_2 = arith.constant 0 : index
    %1 = vector.load %arg2[%c0_1, %c0_2] : memref<8x128xf32, #tpu.memory_space<vmem>>, vector<8x128xf32>
    %2 = vector.extract_strided_slice %1 {offsets = [0, 0], sizes = [1, 128], strides = [1, 1]} : vector<8x128xf32> to vector<1x128xf32>
    %3 = vector.extract_strided_slice %1 {offsets = [1, 0], sizes = [1, 128], strides = [1, 1]} : vector<8x128xf32> to vector<1x128xf32>
    %4 = vector.extract_strided_slice %1 {offsets = [2, 0], sizes = [1, 128], strides = [1, 1]} : vector<8x128xf32> to vector<1x128xf32>
    %5 = vector.extract_strided_slice %1 {offsets = [3, 0], sizes = [1, 128], strides = [1, 1]} : vector<8x128xf32> to vector<1x128xf32>
    %6 = vector.extract_strided_slice %1 {offsets = [4, 0], sizes = [1, 128], strides = [1, 1]} : vector<8x128xf32> to vector<1x128xf32>
    %7 = vector.broadcast %2 : vector<1x128xf32> to vector<8x128xf32>
    %8 = arith.mulf %7, %0 : vector<8x128xf32>
    %9 = vector.broadcast %3 : vector<1x128xf32> to vector<8x128xf32>
    %10 = arith.addf %8, %9 : vector<8x128xf32>
    %11 = vector.broadcast %4 : vector<1x128xf32> to vector<8x128xf32>
    %12 = arith.mulf %11, %0 : vector<8x128xf32>
    %13 = vector.broadcast %5 : vector<1x128xf32> to vector<8x128xf32>
    %14 = arith.addf %12, %13 : vector<8x128xf32>
    %15 = math.sin %14 : vector<8x128xf32>
    %16 = vector.broadcast %6 : vector<1x128xf32> to vector<8x128xf32>
    %17 = arith.mulf %16, %15 : vector<8x128xf32>
    %18 = arith.addf %10, %17 : vector<8x128xf32>
    %c0_3 = arith.constant 0 : index
    %c0_4 = arith.constant 0 : index
    %19 = vector.load %arg4[%c0_3, %c0_4] : memref<128x128xf32, #tpu.memory_space<vmem>>, vector<128x128xf32>
    %cst = arith.constant dense<0.000000e+00> : vector<8x128xf32>
    %20 = tpu.matmul %18, %19, %cst {dimension_numbers = #tpu.dot_dimension_numbers<[1], [0], [0], [1], [0, 0, 1, 1], [], []>} : vector<8x128xf32>, vector<128x128xf32>, vector<8x128xf32> -> vector<8x128xf32>
    %c0_5 = arith.constant 0 : index
    %c0_6 = arith.constant 0 : index
    %21 = vector.load %arg3[%c0_5, %c0_6] : memref<8x128xf32, #tpu.memory_space<vmem>>, vector<8x128xf32>
    %22 = vector.extract_strided_slice %21 {offsets = [0, 0], sizes = [1, 128], strides = [1, 1]} : vector<8x128xf32> to vector<1x128xf32>
    %23 = vector.extract_strided_slice %21 {offsets = [1, 0], sizes = [1, 128], strides = [1, 1]} : vector<8x128xf32> to vector<1x128xf32>
    %24 = vector.extract_strided_slice %21 {offsets = [2, 0], sizes = [1, 128], strides = [1, 1]} : vector<8x128xf32> to vector<1x128xf32>
    %25 = vector.extract_strided_slice %21 {offsets = [3, 0], sizes = [1, 128], strides = [1, 1]} : vector<8x128xf32> to vector<1x128xf32>
    %26 = vector.extract_strided_slice %21 {offsets = [4, 0], sizes = [1, 128], strides = [1, 1]} : vector<8x128xf32> to vector<1x128xf32>
    %27 = vector.broadcast %22 : vector<1x128xf32> to vector<8x128xf32>
    %28 = arith.mulf %27, %20 : vector<8x128xf32>
    %29 = vector.broadcast %23 : vector<1x128xf32> to vector<8x128xf32>
    %30 = arith.addf %28, %29 : vector<8x128xf32>
    %31 = vector.broadcast %24 : vector<1x128xf32> to vector<8x128xf32>
    %32 = arith.mulf %31, %20 : vector<8x128xf32>
    %33 = vector.broadcast %25 : vector<1x128xf32> to vector<8x128xf32>
    %34 = arith.addf %32, %33 : vector<8x128xf32>
    %35 = math.sin %34 : vector<8x128xf32>
    %36 = vector.broadcast %26 : vector<1x128xf32> to vector<8x128xf32>
    %37 = arith.mulf %36, %35 : vector<8x128xf32>
    %38 = arith.addf %30, %37 : vector<8x128xf32>
    %c0_7 = arith.constant 0 : index
    %c0_8 = arith.constant 0 : index
    %39 = vector.load %arg5[%c0_7, %c0_8] : memref<128x128xf32, #tpu.memory_space<vmem>>, vector<128x128xf32>
    %cst_9 = arith.constant dense<0.000000e+00> : vector<8x128xf32>
    %40 = tpu.matmul %38, %39, %cst_9 {dimension_numbers = #tpu.dot_dimension_numbers<[1], [0], [0], [1], [0, 0, 1, 1], [], []>} : vector<8x128xf32>, vector<128x128xf32>, vector<8x128xf32> -> vector<8x128xf32>
    %c0_10 = arith.constant 0 : index
    %c0_11 = arith.constant 0 : index
    %41 = vector.load %arg6[%c0_10, %c0_11] : memref<8x128xf32, #tpu.memory_space<vmem>>, vector<8x128xf32>
    tpu.vector_store %arg6[%c0_10, %c0_11], %40 {strides = array<i32>} : memref<8x128xf32, #tpu.memory_space<vmem>>, vector<8x128xf32>,
    return
  }
  func.func @transform_0(%arg0: i32) -> (i32, i32) {
    %c0_i32 = arith.constant 0 : i32
    %c0_i32_0 = arith.constant 0 : i32
    return %arg0, %c0_i32 : i32, i32
  }
  func.func @transform_1(%arg0: i32) -> (i32, i32) {
    %c0_i32 = arith.constant 0 : i32
    %c0_i32_0 = arith.constant 0 : i32
    %c0_i32_1 = arith.constant 0 : i32
    return %c0_i32, %c0_i32_0 : i32, i32
  }
  func.func @transform_2(%arg0: i32) -> (i32, i32) {
    %c0_i32 = arith.constant 0 : i32
    %c0_i32_0 = arith.constant 0 : i32
    %c0_i32_1 = arith.constant 0 : i32
    return %c0_i32, %c0_i32_0 : i32, i32
  }
  func.func @transform_3(%arg0: i32) -> (i32, i32) {
    %c0_i32 = arith.constant 0 : i32
    %c0_i32_0 = arith.constant 0 : i32
    %c0_i32_1 = arith.constant 0 : i32
    return %c0_i32, %c0_i32_0 : i32, i32
  }
  func.func @transform_4(%arg0: i32) -> (i32, i32) {
    %c0_i32 = arith.constant 0 : i32
    %c0_i32_0 = arith.constant 0 : i32
    %c0_i32_1 = arith.constant 0 : i32
    return %c0_i32, %c0_i32_0 : i32, i32
  }
  func.func @transform_5(%arg0: i32) -> (i32, i32) {
    %c0_i32 = arith.constant 0 : i32
    %c0_i32_0 = arith.constant 0 : i32
    return %arg0, %c0_i32 : i32, i32
  }
}

</mosaic_0001>

<llo_original>
// kernel: tpu_custom_call.1
$region0: #{tpu_custom_call.1}
  #allocation0 [shape = 'u32[]', space=smem, size = 0x4, offset = 0x4, fixed_abs, tag = 'smem constant byte address 0x4 - core index']
  #allocation1 [shape = 'u32[144,128]{1,0:T(1,128)}', space=vmem, size = 0x12000, scoped, tag = 'internal scratch']
  %s0 = inlined_call_operand.hbm [shape: f32[8,128], index: 0, kind: input, shape index: {}]
  %s1 = inlined_call_operand.hbm [shape: f32[8,128], index: 1, kind: input, shape index: {}]
  %s2 = inlined_call_operand.hbm [shape: f32[8,128], index: 2, kind: input, shape index: {}]
  %s3 = inlined_call_operand.hbm [shape: f32[128,128], index: 3, kind: input, shape index: {}]
  %s4 = inlined_call_operand.hbm [shape: f32[128,128], index: 4, kind: input, shape index: {}]
  %s5 = inlined_call_operand.hbm [shape: f32[8,128], index: 5, kind: output, shape index: {}]
  %s6 = sld [smem:[#allocation0]]
  $region50: #{tpu_custom_call.1} parent=0
    _
  %s8 = ssub.s32 1, %s6
  %s9 = scalar_select 0, %s8, %s6
  $region1: #{tpu_custom_call.1} parent=0
    #allocation2 [shape = 'u8[4096]{0}', space=vmem, size = 0x1000, scoped, tag = 'input window, operand 0, single buffered']
    #allocation3 [shape = 's32[1]{0}', space=sflag, size = 0x4, scoped, tag = 'scoped memory for tpu_custom_call.1']
    #allocation4 [shape = 's32[1]{0}', space=sflag, size = 0x4, scoped, tag = 'scoped memory for tpu_custom_call.1']
    #allocation5 [shape = 'u8[4096]{0}', space=vmem, size = 0x1000, scoped, tag = 'input window, operand 1, single buffered']
    #allocation6 [shape = 's32[1]{0}', space=sflag, size = 0x4, scoped, tag = 'scoped memory for tpu_custom_call.1']
    #allocation7 [shape = 'u8[4096]{0}', space=vmem, size = 0x1000, scoped, tag = 'input window, operand 2, single buffered']
    #allocation8 [shape = 'u8[65536]{0}', space=vmem, size = 0x10000, scoped, tag = 'input window, operand 3, single buffered']
    #allocation9 [shape = 's32[1]{0}', space=sflag, size = 0x4, scoped, tag = 'scoped memory for tpu_custom_call.1']
    #allocation10 [shape = 'u8[65536]{0}', space=vmem, size = 0x10000, scoped, tag = 'input window, operand 4, single buffered']
    #allocation11 [shape = 'u8[4096]{0}', space=vmem, size = 0x1000, scoped, tag = 'output window, operand 0, single buffered']
    %10 = vsyncpa [#allocation3], 0
    %11 = vsyncpa [#allocation6], 0
    %12 = vsyncpa [#allocation9], 0
    %13 = vsyncpa [#allocation4], 0
    // Predicated region
    $region2: #{tpu_custom_call.1} parent=1 // pred_check
      _
    $region3: #{tpu_custom_call.1} parent=1 // pred_check_branch
      %15 = sbr.rel (0) target = $region5
    $region4: #{tpu_custom_call.1} parent=1 // pred_region
      %s17 = ssub.s32 128, 128
      %18 = vsyncadd [#allocation3], %s17
      %s20 = sshll.u32 [#allocation2], 4
      %s21 = int_to_ptr.vmem [resolvable:$true] %s20
      %23 = dma.hbm_to_vmem [thread:$0]  %s0, 128, %s21, [#allocation3]
    $region5: #{tpu_custom_call.1} parent=1 // pred_fallthru
      _
    // Predicated region
    $region6: #{tpu_custom_call.1} parent=1 // pred_check
      _
    $region7: #{tpu_custom_call.1} parent=1 // pred_check_branch
      %25 = sbr.rel (0) target = $region9
    $region8: #{tpu_custom_call.1} parent=1 // pred_region
      %s27 = ssub.s32 128, 128
      %28 = vsyncadd [#allocation6], %s27
      %s30 = sshll.u32 [#allocation5], 4
      %s31 = int_to_ptr.vmem [resolvable:$true] %s30
      %33 = dma.hbm_to_vmem [thread:$0]  %s1, 128, %s31, [#allocation6]
    $region9: #{tpu_custom_call.1} parent=1 // pred_fallthru
      _
    // Predicated region
    $region10: #{tpu_custom_call.1} parent=1 // pred_check
      _
    $region11: #{tpu_custom_call.1} parent=1 // pred_check_branch
      %35 = sbr.rel (0) target = $region13
    $region12: #{tpu_custom_call.1} parent=1 // pred_region
      %s37 = ssub.s32 128, 128
      %38 = vsyncadd [#allocation6], %s37
      %s40 = sshll.u32 [#allocation7], 4
      %s41 = int_to_ptr.vmem [resolvable:$true] %s40
      %43 = dma.hbm_to_vmem [thread:$0]  %s2, 128, %s41, [#allocation6]
    $region13: #{tpu_custom_call.1} parent=1 // pred_fallthru
      _
    // Predicated region
    $region14: #{tpu_custom_call.1} parent=1 // pred_check
      _
    $region15: #{tpu_custom_call.1} parent=1 // pred_check_branch
      %45 = sbr.rel (0) target = $region17
    $region16: #{tpu_custom_call.1} parent=1 // pred_region
      %s47 = ssub.s32 2048, 2048
      %48 = vsyncadd [#allocation9], %s47
      %s49 = sshll.u32 [#allocation8], 4
      %s50 = int_to_ptr.vmem [resolvable:$true] %s49
      %55 = dma.hbm_to_vmem [thread:$0]  %s3, 2048, %s50, [#allocation9], 128, 128, 8
    $region17: #{tpu_custom_call.1} parent=1 // pred_fallthru
      _
    // Predicated region
    $region18: #{tpu_custom_call.1} parent=1 // pred_check
      _
    $region19: #{tpu_custom_call.1} parent=1 // pred_check_branch
      %57 = sbr.rel (0) target = $region21
    $region20: #{tpu_custom_call.1} parent=1 // pred_region
      %s59 = ssub.s32 2048, 2048
      %60 = vsyncadd [#allocation9], %s59
      %s61 = sshll.u32 [#allocation10], 4
      %s62 = int_to_ptr.vmem [resolvable:$true] %s61
      %67 = dma.hbm_to_vmem [thread:$0]  %s4, 2048, %s62, [#allocation9], 128, 128, 8
    $region21: #{tpu_custom_call.1} parent=1 // pred_fallthru
      _
    // Predicated region
    $region22: #{tpu_custom_call.1} parent=1 // pred_check
      _
    $region23: #{tpu_custom_call.1} parent=1 // pred_check_branch
      %69 = sbr.rel (0) target = $region25
    $region24: #{tpu_custom_call.1} parent=1 // pred_region
      %70 = dma.done [#allocation3], 128
    $region25: #{tpu_custom_call.1} parent=1 // pred_fallthru
      _
    // Predicated region
    $region26: #{tpu_custom_call.1} parent=1 // pred_check
      _
    $region27: #{tpu_custom_call.1} parent=1 // pred_check_branch
      %72 = sbr.rel (0) target = $region29
    $region28: #{tpu_custom_call.1} parent=1 // pred_region
      %73 = dma.done [#allocation6], 128
    $region29: #{tpu_custom_call.1} parent=1 // pred_fallthru
      _
    // Predicated region
    $region30: #{tpu_custom_call.1} parent=1 // pred_check
      _
    $region31: #{tpu_custom_call.1} parent=1 // pred_check_branch
      %75 = sbr.rel (0) target = $region33
    $region32: #{tpu_custom_call.1} parent=1 // pred_region
      %76 = dma.done [#allocation6], 128
    $region33: #{tpu_custom_call.1} parent=1 // pred_fallthru
      _
    // Predicated region
    $region34: #{tpu_custom_call.1} parent=1 // pred_check
      _
    $region35: #{tpu_custom_call.1} parent=1 // pred_check_branch
      %78 = sbr.rel (0) target = $region37
    $region36: #{tpu_custom_call.1} parent=1 // pred_region
      %79 = dma.done [#allocation9], 2048
    $region37: #{tpu_custom_call.1} parent=1 // pred_fallthru
      _
    // Predicated region
    $region38: #{tpu_custom_call.1} parent=1 // pred_check
      _
    $region39: #{tpu_custom_call.1} parent=1 // pred_check_branch
      %81 = sbr.rel (0) target = $region41
    $region40: #{tpu_custom_call.1} parent=1 // pred_region
      %82 = dma.done [#allocation9], 2048
    $region41: #{tpu_custom_call.1} parent=1 // pred_fallthru
      _
    %v83 = vld [vmem:[#allocation2] sm:$0xff]
    %v84 = vld [vmem:[#allocation5] sm:$0xff]
    %v85 = vlaneseq
    %v86 = vshrl.u32 %v85, 7
    %v87 = vsub.s32 0, %v86
    %v88 = vrot.slane %v84, %v87
    %v89 = vmul.f32 %v88, %v83
    %v90 = vlaneseq
    %v91 = vshrl.u32 %v90, 7
    %v92 = vsub.s32 1, %v91
    %v93 = vrot.slane %v84, %v92
    %v94 = vadd.f32 %v89, %v93
    %v95 = vlaneseq
    %v96 = vshrl.u32 %v95, 7
    %v97 = vsub.s32 2, %v96
    %v98 = vrot.slane %v84, %v97
    %v99 = vmul.f32 %v98, %v83
    %v100 = vlaneseq
    %v101 = vshrl.u32 %v100, 7
    %v102 = vsub.s32 3, %v101
    %v103 = vrot.slane %v84, %v102
    %v104 = vadd.f32 %v99, %v103
    %v105 = vand.u32 2147483647, %v104
    %vm106 = vcmp.le.f32.partialorder %v105, 0.7853982
    %vm107 = vcmp.lt.s32.totalorder %v104, 0
    %v108 = vand.u32 %v104, 2139095040
    %v109 = vshrl.u32 %v108, 23
    %v110 = vsub.s32 %v109, 127
    %v111 = vand.u32 2147483647, %v104
    %v112 = vand.u32 %v111, 8388607
    %v113 = vor.u32 %v112, 8388608
    %v114 = vsub.s32 0, %v113
    %v115 = vadd.s32 %v110, 1
    %vm116 = vcmp.gt.s32.totalorder %v115, 0
    %v117 = vsel %vm116, %v115, 0
    %v118 = vshrl.u32 %v117, 5
    %v119 = vand.u32 %v117, 31
    %v120 = vsub.s32 32, %v119
    %v121 = vshrl.u32 683565275, %v120
    %v122 = vshll.u32 683565275, %v119
    %v123 = vshrl.u32 2475754826, %v120
    %v124 = vor.u32 %v122, %v123
    %v125 = vshll.u32 2475754826, %v119
    %v126 = vshrl.u32 2131351028, %v120
    %v127 = vor.u32 %v125, %v126
    %v128 = vshll.u32 2131351028, %v119
    %v129 = vshrl.u32 2102212464, %v120
    %v130 = vor.u32 %v128, %v129
    %v131 = vshll.u32 2102212464, %v119
    %v132 = vshrl.u32 920167782, %v120
    %v133 = vor.u32 %v131, %v132
    %v134 = vshll.u32 920167782, %v119
    %v135 = vshrl.u32 1326507024, %v120
    %v136 = vor.u32 %v134, %v135
    %vm137 = vcmp.lt.s32.totalorder %v118, 1
    %vm138 = vcmp.lt.s32.totalorder %v118, 2
    %vm139 = vcmp.lt.s32.totalorder %v118, 3
    %vm140 = vcmp.lt.s32.totalorder %v118, 4
    %v141 = vsel %vm137, %v121, %v124
    %v142 = vsel %vm140, %v130, 2102212464
    %v143 = vsel %vm139, %v127, %v142
    %v144 = vsel %vm138, %v141, %v143
    %v145 = vsel %vm137, %v124, %v127
    %v146 = vsel %vm140, %v133, 920167782
    %v147 = vsel %vm139, %v130, %v146
    %v148 = vsel %vm138, %v145, %v147
    %v149 = vsel %vm137, %v127, %v130
    %v150 = vsel %vm140, %v136, 1326507024
    %v151 = vsel %vm139, %v133, %v150
    %v152 = vsel %vm138, %v149, %v151
    %v153 = vshll.u32 %v113, 8
    %v154 = vmul.u32.u64.compose %v153, %v152
    %v155 = vextract.low.u32 %v154
    %v156 = vextract.high.u32 %v154
    %v157 = vmul.u32.u64.compose %v153, %v148
    %v158 = vextract.low.u32 %v157
    %v159 = vextract.high.u32 %v157
    %v160 = vmul.u32 %v153, %v144
    %v161 = vadd.s32 %v156, %v158
    %vm162 = vc.u32 %v156, %v158
    %v163 = vadd.s32 %v159, 1
    %v164 = vsel %vm162, %v163, %v159
    %v165 = vadd.s32 %v160, %v164
    %v166 = vadd.s32 %v165, 536870912
    %v167 = vshrl.u32 %v166, 30
    %v168 = vshll.u32 %v167, 30
    %v169 = vsub.s32 %v165, %v168
    %vm170 = vcmp.lt.s32.totalorder %v169, 0
    %v171 = vsub.s32 0, %v169
    %v172 = vsel %vm170, %v171, %v169
    %v173 = vclz %v172
    %v174 = vsub.s32 %v173, 2
    %vm175 = vcmp.gt.s32.totalorder 0, %v174
    %v176 = vsel %vm175, 0, %v174
    %v177 = vsub.s32 32, %v176
    %v178 = vshll.u32 %v169, %v176
    %v179 = vshrl.u32 %v161, %v177
    %v180 = vor.u32 %v178, %v179
    %v181 = vsub.s32 4294967266, %v176
    %v182 = vadd.s32 %v181, 127
    %v183 = vshll.u32 %v182, 23
    %v184 = vor.u32 4788187, %v183
    %v185 = vand.u32 2147483647, %v184
    %v187 = vcvt.s32.f32 %v180
    %v188 = vmul.f32 %v187, %v185
    %v189 = vxor.u32 %v188, 2147483648
    %v190 = vsel %vm107, %v189, %v188
    %v191 = vsub.s32 4, %v167
    %v192 = vsel %vm107, %v191, %v167
    %v193 = vsel %vm106, %v104, %v190
    %v194 = vsel %vm106, 0, %v192
    %v195 = vcosq.f32.pop %v193
    %v196 = vsinq.f32.pop %v193
    %vm197 = vweird.f32 %v104
    %v198 = vadd.s32 %v194, 3
    %v199 = vand.u32 %v198, 3
    %vm200 = vcmp.lt.s32.totalorder %v199, 2
    %vm201 = vcmp.eq.s32.totalorder %v199, 0
    %v202 = vxor.u32 %v196, 2147483648
    %v203 = vsel %vm201, %v195, %v202
    %vm204 = vcmp.eq.s32.totalorder %v199, 2
    %v205 = vxor.u32 %v195, 2147483648
    %v206 = vsel %vm204, %v205, %v196
    %v207 = vsel %vm200, %v203, %v206
    %v208 = vsel %vm197, nan, %v207
    %v209 = vlaneseq
    %v210 = vshrl.u32 %v209, 7
    %v211 = vsub.s32 4, %v210
    %v212 = vrot.slane %v84, %v211
    %v213 = vmul.f32 %v212, %v208
    %v214 = vadd.f32 %v94, %v213
    %v215 = vld [vmem:[#allocation8] sm:$0xff]
    %v216 = vld [vmem:[#allocation8 + $0x8] sm:$0xff]
    %v217 = vld [vmem:[#allocation8 + $0x10] sm:$0xff]
    %v218 = vld [vmem:[#allocation8 + $0x18] sm:$0xff]
    %v219 = vld [vmem:[#allocation8 + $0x20] sm:$0xff]
    %v220 = vld [vmem:[#allocation8 + $0x28] sm:$0xff]
    %v221 = vld [vmem:[#allocation8 + $0x30] sm:$0xff]
    %v222 = vld [vmem:[#allocation8 + $0x38] sm:$0xff]
    %v223 = vld [vmem:[#allocation8 + $0x40] sm:$0xff]
    %v224 = vld [vmem:[#allocation8 + $0x48] sm:$0xff]
    %v225 = vld [vmem:[#allocation8 + $0x50] sm:$0xff]
    %v226 = vld [vmem:[#allocation8 + $0x58] sm:$0xff]
    %v227 = vld [vmem:[#allocation8 + $0x60] sm:$0xff]
    %v228 = vld [vmem:[#allocation8 + $0x68] sm:$0xff]
    %v229 = vld [vmem:[#allocation8 + $0x70] sm:$0xff]
    %v230 = vld [vmem:[#allocation8 + $0x78] sm:$0xff]
    %231 = vmatprep.subr.mxu0 0.0
    %232 = vmatpush1.msra.mxu0 %v230
    %233 = vmatprep.subr.mxu0 0.0
    %234 = vmatpush1.msra.mxu0 %v229
    %235 = vmatprep.subr.mxu0 0.0
    %236 = vmatpush1.msra.mxu0 %v228
    %237 = vmatprep.subr.mxu0 0.0
    %238 = vmatpush1.msra.mxu0 %v227
    %239 = vmatprep.subr.mxu0 0.0
    %240 = vmatpush1.msra.mxu0 %v226
    %241 = vmatprep.subr.mxu0 0.0
    %242 = vmatpush1.msra.mxu0 %v225
    %243 = vmatprep.subr.mxu0 0.0
    %244 = vmatpush1.msra.mxu0 %v224
    %245 = vmatprep.subr.mxu0 0.0
    %246 = vmatpush1.msra.mxu0 %v223
    %247 = vmatprep.subr.mxu0 0.0
    %248 = vmatpush1.msra.mxu0 %v222
    %249 = vmatprep.subr.mxu0 0.0
    %250 = vmatpush1.msra.mxu0 %v221
    %251 = vmatprep.subr.mxu0 0.0
    %252 = vmatpush1.msra.mxu0 %v220
    %253 = vmatprep.subr.mxu0 0.0
    %254 = vmatpush1.msra.mxu0 %v219
    %255 = vmatprep.subr.mxu0 0.0
    %256 = vmatpush1.msra.mxu0 %v218
    %257 = vmatprep.subr.mxu0 0.0
    %258 = vmatpush1.msra.mxu0 %v217
    %259 = vmatprep.subr.mxu0 0.0
    %260 = vmatpush1.msra.mxu0 %v216
    %261 = vmatprep.subr.mxu0 0.0
    %262 = vmatpush1.msra.mxu0 %v215
    %263 = vmatprep.subr.mxu0 0.0
    %264 = vmatpush2.msra.mxu0 0.0
    %265 = vmatprep.subr.mxu0 0.0
    %266 = vmatpush2.msra.mxu0 0.0
    %267 = vmatprep.subr.mxu0 0.0
    %268 = vmatpush2.msra.mxu0 0.0
    %269 = vmatprep.subr.mxu0 0.0
    %270 = vmatpush2.msra.mxu0 0.0
    %271 = vmatprep.subr.mxu0 0.0
    %272 = vmatpush2.msra.mxu0 0.0
    %273 = vmatprep.subr.mxu0 0.0
    %274 = vmatpush2.msra.mxu0 0.0
    %275 = vmatprep.subr.mxu0 0.0
    %276 = vmatpush2.msra.mxu0 0.0
    %277 = vmatprep.subr.mxu0 0.0
    %278 = vmatpush2.msra.mxu0 0.0
    %279 = vmatprep.subr.mxu0 0.0
    %280 = vmatpush2.msra.mxu0 0.0
    %281 = vmatprep.subr.mxu0 0.0
    %282 = vmatpush2.msra.mxu0 0.0
    %283 = vmatprep.subr.mxu0 0.0
    %284 = vmatpush2.msra.mxu0 0.0
    %285 = vmatprep.subr.mxu0 0.0
    %286 = vmatpush2.msra.mxu0 0.0
    %287 = vmatprep.subr.mxu0 0.0
    %288 = vmatpush2.msra.mxu0 0.0
    %289 = vmatprep.subr.mxu0 0.0
    %290 = vmatpush2.msra.mxu0 0.0
    %291 = vmatprep.subr.mxu0 0.0
    %292 = vmatpush2.msra.mxu0 0.0
    %293 = vmatprep.subr.mxu0 0.0
    %294 = vmatpush2.msra.mxu0 0.0
    %295 = vmatprep.mubr.f32.mxu0 0.0
    %296 = vmatmul.mubr.f32.gmra.mxu0 %v214
    %v297 = vpop.f32.mrf.mxu0
    %v298 = vadd.f32 0.0, %v297
    %v299 = vpop.f32.mrf.mxu0
    %300 = vdwg.mxu0
    %v301 = vld [vmem:[#allocation7] sm:$0xff]
    %v302 = vlaneseq
    %v303 = vshrl.u32 %v302, 7
    %v304 = vsub.s32 0, %v303
    %v305 = vrot.slane %v301, %v304
    %v306 = vmul.f32 %v305, %v298
    %v307 = vlaneseq
    %v308 = vshrl.u32 %v307, 7
    %v309 = vsub.s32 1, %v308
    %v310 = vrot.slane %v301, %v309
    %v311 = vadd.f32 %v306, %v310
    %v312 = vlaneseq
    %v313 = vshrl.u32 %v312, 7
    %v314 = vsub.s32 2, %v313
    %v315 = vrot.slane %v301, %v314
    %v316 = vmul.f32 %v315, %v298
    %v317 = vlaneseq
    %v318 = vshrl.u32 %v317, 7
    %v319 = vsub.s32 3, %v318
    %v320 = vrot.slane %v301, %v319
    %v321 = vadd.f32 %v316, %v320
    %v322 = vand.u32 2147483647, %v321
    %vm323 = vcmp.le.f32.partialorder %v322, 0.7853982
    %vm324 = vcmp.lt.s32.totalorder %v321, 0
    %v325 = vand.u32 %v321, 2139095040
    %v326 = vshrl.u32 %v325, 23
    %v327 = vsub.s32 %v326, 127
    %v328 = vand.u32 2147483647, %v321
    %v329 = vand.u32 %v328, 8388607
    %v330 = vor.u32 %v329, 8388608
    %v331 = vsub.s32 0, %v330
    %v332 = vadd.s32 %v327, 1
    %vm333 = vcmp.gt.s32.totalorder %v332, 0
    %v334 = vsel %vm333, %v332, 0
    %v335 = vshrl.u32 %v334, 5
    %v336 = vand.u32 %v334, 31
    %v337 = vsub.s32 32, %v336
    %v338 = vshrl.u32 683565275, %v337
    %v339 = vshll.u32 683565275, %v336
    %v340 = vshrl.u32 2475754826, %v337
    %v341 = vor.u32 %v339, %v340
    %v342 = vshll.u32 2475754826, %v336
    %v343 = vshrl.u32 2131351028, %v337
    %v344 = vor.u32 %v342, %v343
    %v345 = vshll.u32 2131351028, %v336
    %v346 = vshrl.u32 2102212464, %v337
    %v347 = vor.u32 %v345, %v346
    %v348 = vshll.u32 2102212464, %v336
    %v349 = vshrl.u32 920167782, %v337
    %v350 = vor.u32 %v348, %v349
    %v351 = vshll.u32 920167782, %v336
    %v352 = vshrl.u32 1326507024, %v337
    %v353 = vor.u32 %v351, %v352
    %vm354 = vcmp.lt.s32.totalorder %v335, 1
    %vm355 = vcmp.lt.s32.totalorder %v335, 2
    %vm356 = vcmp.lt.s32.totalorder %v335, 3
    %vm357 = vcmp.lt.s32.totalorder %v335, 4
    %v358 = vsel %vm354, %v338, %v341
    %v359 = vsel %vm357, %v347, 2102212464
    %v360 = vsel %vm356, %v344, %v359
    %v361 = vsel %vm355, %v358, %v360
    %v362 = vsel %vm354, %v341, %v344
    %v363 = vsel %vm357, %v350, 920167782
    %v364 = vsel %vm356, %v347, %v363
    %v365 = vsel %vm355, %v362, %v364
    %v366 = vsel %vm354, %v344, %v347
    %v367 = vsel %vm357, %v353, 1326507024
    %v368 = vsel %vm356, %v350, %v367
    %v369 = vsel %vm355, %v366, %v368
    %v370 = vshll.u32 %v330, 8
    %v371 = vmul.u32.u64.compose %v370, %v369
    %v372 = vextract.low.u32 %v371
    %v373 = vextract.high.u32 %v371
    %v374 = vmul.u32.u64.compose %v370, %v365
    %v375 = vextract.low.u32 %v374
    %v376 = vextract.high.u32 %v374
    %v377 = vmul.u32 %v370, %v361
    %v378 = vadd.s32 %v373, %v375
    %vm379 = vc.u32 %v373, %v375
    %v380 = vadd.s32 %v376, 1
    %v381 = vsel %vm379, %v380, %v376
    %v382 = vadd.s32 %v377, %v381
    %v383 = vadd.s32 %v382, 536870912
    %v384 = vshrl.u32 %v383, 30
    %v385 = vshll.u32 %v384, 30
    %v386 = vsub.s32 %v382, %v385
    %vm387 = vcmp.lt.s32.totalorder %v386, 0
    %v388 = vsub.s32 0, %v386
    %v389 = vsel %vm387, %v388, %v386
    %v390 = vclz %v389
    %v391 = vsub.s32 %v390, 2
    %vm392 = vcmp.gt.s32.totalorder 0, %v391
    %v393 = vsel %vm392, 0, %v391
    %v394 = vsub.s32 32, %v393
    %v395 = vshll.u32 %v386, %v393
    %v396 = vshrl.u32 %v378, %v394
    %v397 = vor.u32 %v395, %v396
    %v398 = vsub.s32 4294967266, %v393
    %v399 = vadd.s32 %v398, 127
    %v400 = vshll.u32 %v399, 23
    %v401 = vor.u32 4788187, %v400
    %v402 = vand.u32 2147483647, %v401
    %v404 = vcvt.s32.f32 %v397
    %v405 = vmul.f32 %v404, %v402
    %v406 = vxor.u32 %v405, 2147483648
    %v407 = vsel %vm324, %v406, %v405
    %v408 = vsub.s32 4, %v384
    %v409 = vsel %vm324, %v408, %v384
    %v410 = vsel %vm323, %v321, %v407
    %v411 = vsel %vm323, 0, %v409
    %v412 = vcosq.f32.pop %v410
    %v413 = vsinq.f32.pop %v410
    %vm414 = vweird.f32 %v321
    %v415 = vadd.s32 %v411, 3
    %v416 = vand.u32 %v415, 3
    %vm417 = vcmp.lt.s32.totalorder %v416, 2
    %vm418 = vcmp.eq.s32.totalorder %v416, 0
    %v419 = vxor.u32 %v413, 2147483648
    %v420 = vsel %vm418, %v412, %v419
    %vm421 = vcmp.eq.s32.totalorder %v416, 2
    %v422 = vxor.u32 %v412, 2147483648
    %v423 = vsel %vm421, %v422, %v413
    %v424 = vsel %vm417, %v420, %v423
    %v425 = vsel %vm414, nan, %v424
    %v426 = vlaneseq
    %v427 = vshrl.u32 %v426, 7
    %v428 = vsub.s32 4, %v427
    %v429 = vrot.slane %v301, %v428
    %v430 = vmul.f32 %v429, %v425
    %v431 = vadd.f32 %v311, %v430
    %v432 = vld [vmem:[#allocation10] sm:$0xff]
    %v433 = vld [vmem:[#allocation10 + $0x8] sm:$0xff]
    %v434 = vld [vmem:[#allocation10 + $0x10] sm:$0xff]
    %v435 = vld [vmem:[#allocation10 + $0x18] sm:$0xff]
    %v436 = vld [vmem:[#allocation10 + $0x20] sm:$0xff]
    %v437 = vld [vmem:[#allocation10 + $0x28] sm:$0xff]
    %v438 = vld [vmem:[#allocation10 + $0x30] sm:$0xff]
    %v439 = vld [vmem:[#allocation10 + $0x38] sm:$0xff]
    %v440 = vld [vmem:[#allocation10 + $0x40] sm:$0xff]
    %v441 = vld [vmem:[#allocation10 + $0x48] sm:$0xff]
    %v442 = vld [vmem:[#allocation10 + $0x50] sm:$0xff]
    %v443 = vld [vmem:[#allocation10 + $0x58] sm:$0xff]
    %v444 = vld [vmem:[#allocation10 + $0x60] sm:$0xff]
    %v445 = vld [vmem:[#allocation10 + $0x68] sm:$0xff]
    %v446 = vld [vmem:[#allocation10 + $0x70] sm:$0xff]
    %v447 = vld [vmem:[#allocation10 + $0x78] sm:$0xff]
    %448 = vmatprep.subr.mxu0 0.0
    %449 = vmatpush1.msra.mxu0 %v447
    %450 = vmatprep.subr.mxu0 0.0
    %451 = vmatpush1.msra.mxu0 %v446
    %452 = vmatprep.subr.mxu0 0.0
    %453 = vmatpush1.msra.mxu0 %v445
    %454 = vmatprep.subr.mxu0 0.0
    %455 = vmatpush1.msra.mxu0 %v444
    %456 = vmatprep.subr.mxu0 0.0
    %457 = vmatpush1.msra.mxu0 %v443
    %458 = vmatprep.subr.mxu0 0.0
    %459 = vmatpush1.msra.mxu0 %v442
    %460 = vmatprep.subr.mxu0 0.0
    %461 = vmatpush1.msra.mxu0 %v441
    %462 = vmatprep.subr.mxu0 0.0
    %463 = vmatpush1.msra.mxu0 %v440
    %464 = vmatprep.subr.mxu0 0.0
    %465 = vmatpush1.msra.mxu0 %v439
    %466 = vmatprep.subr.mxu0 0.0
    %467 = vmatpush1.msra.mxu0 %v438
    %468 = vmatprep.subr.mxu0 0.0
    %469 = vmatpush1.msra.mxu0 %v437
    %470 = vmatprep.subr.mxu0 0.0
    %471 = vmatpush1.msra.mxu0 %v436
    %472 = vmatprep.subr.mxu0 0.0
    %473 = vmatpush1.msra.mxu0 %v435
    %474 = vmatprep.subr.mxu0 0.0
    %475 = vmatpush1.msra.mxu0 %v434
    %476 = vmatprep.subr.mxu0 0.0
    %477 = vmatpush1.msra.mxu0 %v433
    %478 = vmatprep.subr.mxu0 0.0
    %479 = vmatpush1.msra.mxu0 %v432
    %480 = vmatprep.subr.mxu0 0.0
    %481 = vmatpush2.msra.mxu0 0.0
    %482 = vmatprep.subr.mxu0 0.0
    %483 = vmatpush2.msra.mxu0 0.0
    %484 = vmatprep.subr.mxu0 0.0
    %485 = vmatpush2.msra.mxu0 0.0
    %486 = vmatprep.subr.mxu0 0.0
    %487 = vmatpush2.msra.mxu0 0.0
    %488 = vmatprep.subr.mxu0 0.0
    %489 = vmatpush2.msra.mxu0 0.0
    %490 = vmatprep.subr.mxu0 0.0
    %491 = vmatpush2.msra.mxu0 0.0
    %492 = vmatprep.subr.mxu0 0.0
    %493 = vmatpush2.msra.mxu0 0.0
    %494 = vmatprep.subr.mxu0 0.0
    %495 = vmatpush2.msra.mxu0 0.0
    %496 = vmatprep.subr.mxu0 0.0
    %497 = vmatpush2.msra.mxu0 0.0
    %498 = vmatprep.subr.mxu0 0.0
    %499 = vmatpush2.msra.mxu0 0.0
    %500 = vmatprep.subr.mxu0 0.0
    %501 = vmatpush2.msra.mxu0 0.0
    %502 = vmatprep.subr.mxu0 0.0
    %503 = vmatpush2.msra.mxu0 0.0
    %504 = vmatprep.subr.mxu0 0.0
    %505 = vmatpush2.msra.mxu0 0.0
    %506 = vmatprep.subr.mxu0 0.0
    %507 = vmatpush2.msra.mxu0 0.0
    %508 = vmatprep.subr.mxu0 0.0
    %509 = vmatpush2.msra.mxu0 0.0
    %510 = vmatprep.subr.mxu0 0.0
    %511 = vmatpush2.msra.mxu0 0.0
    %512 = vmatprep.mubr.f32.mxu0 0.0
    %513 = vmatmul.mubr.f32.gmra.mxu0 %v431
    %v514 = vpop.f32.mrf.mxu0
    %v515 = vadd.f32 0.0, %v514
    %v516 = vpop.f32.mrf.mxu0
    %517 = vdwg.mxu0
    %518 = vst [vmem:[#allocation11] sm:$0xff] %v515
    // Predicated region
    $region42: #{tpu_custom_call.1} parent=1 // pred_check
      _
    $region43: #{tpu_custom_call.1} parent=1 // pred_check_branch
      %520 = sbr.rel (0) target = $region45
    $region44: #{tpu_custom_call.1} parent=1 // pred_region
      %s522 = ssub.s32 128, 128
      %523 = vsyncadd [#allocation4], %s522
      %s525 = sshll.u32 [#allocation11], 4
      %s526 = int_to_ptr.vmem [resolvable:$true] %s525
      %528 = dma.vmem_to_hbm [thread:$0]  %s526, 128, %s5, [#allocation4]
    $region45: #{tpu_custom_call.1} parent=1 // pred_fallthru
      _
    // Predicated region
    $region46: #{tpu_custom_call.1} parent=1 // pred_check
      _
    $region47: #{tpu_custom_call.1} parent=1 // pred_check_branch
      %530 = sbr.rel (0) target = $region49
    $region48: #{tpu_custom_call.1} parent=1 // pred_region
      %531 = dma.done [#allocation4], 128
    $region49: #{tpu_custom_call.1} parent=1 // pred_fallthru
      _
    %532 = vsyncpa [#allocation3], 1
    %533 = vsyncpa [#allocation6], 1
    %534 = vsyncpa [#allocation9], 1
    %535 = vsyncpa [#allocation4], 1

// kernel: tpu_custom_call.1
$region0: #{tpu_custom_call.1}
  #allocation0 [shape = 'u32[]', space=smem, size = 0x4, offset = 0x4, fixed_abs, tag = 'smem constant byte address 0x4 - core index']
  #allocation1 [shape = 'u32[144,128]{1,0:T(1,128)}', space=vmem, size = 0x12000, scoped, tag = 'internal scratch']
  %s0 = inlined_call_operand.hbm [shape: f32[8,128], index: 0, kind: input, shape index: {}]
  %s1 = inlined_call_operand.hbm [shape: f32[8,128], index: 1, kind: input, shape index: {}]
  %s2 = inlined_call_operand.hbm [shape: f32[8,128], index: 2, kind: input, shape index: {}]
  %s3 = inlined_call_operand.hbm [shape: f32[128,128], index: 3, kind: input, shape index: {}]
  %s4 = inlined_call_operand.hbm [shape: f32[128,128], index: 4, kind: input, shape index: {}]
  %s5 = inlined_call_operand.hbm [shape: f32[8,128], index: 5, kind: output, shape index: {}]
  %s6 = sld [smem:[#allocation0]]
  $region50: #{tpu_custom_call.1} parent=0
    _
  %s8 = ssub.s32 1, %s6
  %s9 = scalar_select 0, %s8, %s6
  $region1: #{tpu_custom_call.1} parent=0
    #allocation2 [shape = 'u8[4096]{0}', space=vmem, size = 0x1000, scoped, tag = 'input window, operand 0, single buffered']
    #allocation3 [shape = 's32[1]{0}', space=sflag, size = 0x4, scoped, tag = 'scoped memory for tpu_custom_call.1']
    #allocation4 [shape = 's32[1]{0}', space=sflag, size = 0x4, scoped, tag = 'scoped memory for tpu_custom_call.1']
    #allocation5 [shape = 'u8[4096]{0}', space=vmem, size = 0x1000, scoped, tag = 'input window, operand 1, single buffered']
    #allocation6 [shape = 's32[1]{0}', space=sflag, size = 0x4, scoped, tag = 'scoped memory for tpu_custom_call.1']
    #allocation7 [shape = 'u8[4096]{0}', space=vmem, size = 0x1000, scoped, tag = 'input window, operand 2, single buffered']
    #allocation8 [shape = 'u8[65536]{0}', space=vmem, size = 0x10000, scoped, tag = 'input window, operand 3, single buffered']
    #allocation9 [shape = 's32[1]{0}', space=sflag, size = 0x4, scoped, tag = 'scoped memory for tpu_custom_call.1']
    #allocation10 [shape = 'u8[65536]{0}', space=vmem, size = 0x10000, scoped, tag = 'input window, operand 4, single buffered']
    #allocation11 [shape = 'u8[4096]{0}', space=vmem, size = 0x1000, scoped, tag = 'output window, operand 0, single buffered']
    %10 = vsyncpa [#allocation3], 0
    %11 = vsyncpa [#allocation6], 0
    %12 = vsyncpa [#allocation9], 0
    %13 = vsyncpa [#allocation4], 0
    // Predicated region
    $region2: #{tpu_custom_call.1} parent=1 // pred_check
      _
    $region3: #{tpu_custom_call.1} parent=1 // pred_check_branch
      %15 = sbr.rel (0) target = $region5
    $region4: #{tpu_custom_call.1} parent=1 // pred_region
      %s17 = ssub.s32 128, 128
      %18 = vsyncadd [#allocation3], %s17
      %s20 = sshll.u32 [#allocation2], 4
      %s21 = int_to_ptr.vmem [resolvable:$true] %s20
      %23 = dma.hbm_to_vmem [thread:$0]  %s0, 128, %s21, [#allocation3]
    $region5: #{tpu_custom_call.1} parent=1 // pred_fallthru
      _
    // Predicated region
    $region6: #{tpu_custom_call.1} parent=1 // pred_check
      _
    $region7: #{tpu_custom_call.1} parent=1 // pred_check_branch
      %25 = sbr.rel (0) target = $region9
    $region8: #{tpu_custom_call.1} parent=1 // pred_region
      %s27 = ssub.s32 128, 128
      %28 = vsyncadd [#allocation6], %s27
      %s30 = sshll.u32 [#allocation5], 4
      %s31 = int_to_ptr.vmem [resolvable:$true] %s30
      %33 = dma.hbm_to_vmem [thread:$0]  %s1, 128, %s31, [#allocation6]
    $region9: #{tpu_custom_call.1} parent=1 // pred_fallthru
      _
    // Predicated region
    $region10: #{tpu_custom_call.1} parent=1 // pred_check
      _
    $region11: #{tpu_custom_call.1} parent=1 // pred_check_branch
      %35 = sbr.rel (0) target = $region13
    $region12: #{tpu_custom_call.1} parent=1 // pred_region
      %s37 = ssub.s32 128, 128
      %38 = vsyncadd [#allocation6], %s37
      %s40 = sshll.u32 [#allocation7], 4
      %s41 = int_to_ptr.vmem [resolvable:$true] %s40
      %43 = dma.hbm_to_vmem [thread:$0]  %s2, 128, %s41, [#allocation6]
    $region13: #{tpu_custom_call.1} parent=1 // pred_fallthru
      _
    // Predicated region
    $region14: #{tpu_custom_call.1} parent=1 // pred_check
      _
    $region15: #{tpu_custom_call.1} parent=1 // pred_check_branch
      %45 = sbr.rel (0) target = $region17
    $region16: #{tpu_custom_call.1} parent=1 // pred_region
      %s47 = ssub.s32 2048, 2048
      %48 = vsyncadd [#allocation9], %s47
      %s49 = sshll.u32 [#allocation8], 4
      %s50 = int_to_ptr.vmem [resolvable:$true] %s49
      %55 = dma.hbm_to_vmem [thread:$0]  %s3, 2048, %s50, [#allocation9], 128, 128, 8
    $region17: #{tpu_custom_call.1} parent=1 // pred_fallthru
      _
    // Predicated region
    $region18: #{tpu_custom_call.1} parent=1 // pred_check
      _
    $region19: #{tpu_custom_call.1} parent=1 // pred_check_branch
      %57 = sbr.rel (0) target = $region21
    $region20: #{tpu_custom_call.1} parent=1 // pred_region
      %s59 = ssub.s32 2048, 2048
      %60 = vsyncadd [#allocation9], %s59
      %s61 = sshll.u32 [#allocation10], 4
      %s62 = int_to_ptr.vmem [resolvable:$true] %s61
      %67 = dma.hbm_to_vmem [thread:$0]  %s4, 2048, %s62, [#allocation9], 128, 128, 8
    $region21: #{tpu_custom_call.1} parent=1 // pred_fallthru
      _
    // Predicated region
    $region22: #{tpu_custom_call.1} parent=1 // pred_check
      _
    $region23: #{tpu_custom_call.1} parent=1 // pred_check_branch
      %69 = sbr.rel (0) target = $region25
    $region24: #{tpu_custom_call.1} parent=1 // pred_region
      %70 = dma.done [#allocation3], 128
    $region25: #{tpu_custom_call.1} parent=1 // pred_fallthru
      _
    // Predicated region
    $region26: #{tpu_custom_call.1} parent=1 // pred_check
      _
    $region27: #{tpu_custom_call.1} parent=1 // pred_check_branch
      %72 = sbr.rel (0) target = $region29
    $region28: #{tpu_custom_call.1} parent=1 // pred_region
      %73 = dma.done [#allocation6], 128
    $region29: #{tpu_custom_call.1} parent=1 // pred_fallthru
      _
    // Predicated region
    $region30: #{tpu_custom_call.1} parent=1 // pred_check
      _
    $region31: #{tpu_custom_call.1} parent=1 // pred_check_branch
      %75 = sbr.rel (0) target = $region33
    $region32: #{tpu_custom_call.1} parent=1 // pred_region
      %76 = dma.done [#allocation6], 128
    $region33: #{tpu_custom_call.1} parent=1 // pred_fallthru
      _
    // Predicated region
    $region34: #{tpu_custom_call.1} parent=1 // pred_check
      _
    $region35: #{tpu_custom_call.1} parent=1 // pred_check_branch
      %78 = sbr.rel (0) target = $region37
    $region36: #{tpu_custom_call.1} parent=1 // pred_region
      %79 = dma.done [#allocation9], 2048
    $region37: #{tpu_custom_call.1} parent=1 // pred_fallthru
      _
    // Predicated region
    $region38: #{tpu_custom_call.1} parent=1 // pred_check
      _
    $region39: #{tpu_custom_call.1} parent=1 // pred_check_branch
      %81 = sbr.rel (0) target = $region41
    $region40: #{tpu_custom_call.1} parent=1 // pred_region
      %82 = dma.done [#allocation9], 2048
    $region41: #{tpu_custom_call.1} parent=1 // pred_fallthru
      _
    %v83 = vld [vmem:[#allocation2] sm:$0xff]
    %v84 = vld [vmem:[#allocation5] sm:$0xff]
    %v85 = vlaneseq
    %v86 = vshrl.u32 %v85, 7
    %v87 = vsub.s32 0, %v86
    %v88 = vrot.slane %v84, %v87
    %v89 = vmul.f32 %v88, %v83
    %v90 = vlaneseq
    %v91 = vshrl.u32 %v90, 7
    %v92 = vsub.s32 1, %v91
    %v93 = vrot.slane %v84, %v92
    %v94 = vadd.f32 %v89, %v93
    %v95 = vlaneseq
    %v96 = vshrl.u32 %v95, 7
    %v97 = vsub.s32 2, %v96
    %v98 = vrot.slane %v84, %v97
    %v99 = vmul.f32 %v98, %v83
    %v100 = vlaneseq
    %v101 = vshrl.u32 %v100, 7
    %v102 = vsub.s32 3, %v101
    %v103 = vrot.slane %v84, %v102
    %v104 = vadd.f32 %v99, %v103
    %v105 = vand.u32 2147483647, %v104
    %vm106 = vcmp.le.f32.partialorder %v105, 0.7853982
    %vm107 = vcmp.lt.s32.totalorder %v104, 0
    %v108 = vand.u32 %v104, 2139095040
    %v109 = vshrl.u32 %v108, 23
    %v110 = vsub.s32 %v109, 127
    %v111 = vand.u32 2147483647, %v104
    %v112 = vand.u32 %v111, 8388607
    %v113 = vor.u32 %v112, 8388608
    %v114 = vsub.s32 0, %v113
    %v115 = vadd.s32 %v110, 1
    %vm116 = vcmp.gt.s32.totalorder %v115, 0
    %v117 = vsel %vm116, %v115, 0
    %v118 = vshrl.u32 %v117, 5
    %v119 = vand.u32 %v117, 31
    %v120 = vsub.s32 32, %v119
    %v121 = vshrl.u32 683565275, %v120
    %v122 = vshll.u32 683565275, %v119
    %v123 = vshrl.u32 2475754826, %v120
    %v124 = vor.u32 %v122, %v123
    %v125 = vshll.u32 2475754826, %v119
    %v126 = vshrl.u32 2131351028, %v120
    %v127 = vor.u32 %v125, %v126
    %v128 = vshll.u32 2131351028, %v119
    %v129 = vshrl.u32 2102212464, %v120
    %v130 = vor.u32 %v128, %v129
    %v131 = vshll.u32 2102212464, %v119
    %v132 = vshrl.u32 920167782, %v120
    %v133 = vor.u32 %v131, %v132
    %v134 = vshll.u32 920167782, %v119
    %v135 = vshrl.u32 1326507024, %v120
    %v136 = vor.u32 %v134, %v135
    %vm137 = vcmp.lt.s32.totalorder %v118, 1
    %vm138 = vcmp.lt.s32.totalorder %v118, 2
    %vm139 = vcmp.lt.s32.totalorder %v118, 3
    %vm140 = vcmp.lt.s32.totalorder %v118, 4
    %v141 = vsel %vm137, %v121, %v124
    %v142 = vsel %vm140, %v130, 2102212464
    %v143 = vsel %vm139, %v127, %v142
    %v144 = vsel %vm138, %v141, %v143
    %v145 = vsel %vm137, %v124, %v127
    %v146 = vsel %vm140, %v133, 920167782
    %v147 = vsel %vm139, %v130, %v146
    %v148 = vsel %vm138, %v145, %v147
    %v149 = vsel %vm137, %v127, %v130
    %v150 = vsel %vm140, %v136, 1326507024
    %v151 = vsel %vm139, %v133, %v150
    %v152 = vsel %vm138, %v149, %v151
    %v153 = vshll.u32 %v113, 8
    %v154 = vmul.u32.u64.compose %v153, %v152
    %v155 = vextract.low.u32 %v154
    %v156 = vextract.high.u32 %v154
    %v157 = vmul.u32.u64.compose %v153, %v148
    %v158 = vextract.low.u32 %v157
    %v159 = vextract.high.u32 %v157
    %v160 = vmul.u32 %v153, %v144
    %v161 = vadd.s32 %v156, %v158
    %vm162 = vc.u32 %v156, %v158
    %v163 = vadd.s32 %v159, 1
    %v164 = vsel %vm162, %v163, %v159
    %v165 = vadd.s32 %v160, %v164
    %v166 = vadd.s32 %v165, 536870912
    %v167 = vshrl.u32 %v166, 30
    %v168 = vshll.u32 %v167, 30
    %v169 = vsub.s32 %v165, %v168
    %vm170 = vcmp.lt.s32.totalorder %v169, 0
    %v171 = vsub.s32 0, %v169
    %v172 = vsel %vm170, %v171, %v169
    %v173 = vclz %v172
    %v174 = vsub.s32 %v173, 2
    %vm175 = vcmp.gt.s32.totalorder 0, %v174
    %v176 = vsel %vm175, 0, %v174
    %v177 = vsub.s32 32, %v176
    %v178 = vshll.u32 %v169, %v176
    %v179 = vshrl.u32 %v161, %v177
    %v180 = vor.u32 %v178, %v179
    %v181 = vsub.s32 4294967266, %v176
    %v182 = vadd.s32 %v181, 127
    %v183 = vshll.u32 %v182, 23
    %v184 = vor.u32 4788187, %v183
    %v185 = vand.u32 2147483647, %v184
    %v187 = vcvt.s32.f32 %v180
    %v188 = vmul.f32 %v187, %v185
    %v189 = vxor.u32 %v188, 2147483648
    %v190 = vsel %vm107, %v189, %v188
    %v191 = vsub.s32 4, %v167
    %v192 = vsel %vm107, %v191, %v167
    %v193 = vsel %vm106, %v104, %v190
    %v194 = vsel %vm106, 0, %v192
    %v195 = vcosq.f32.pop %v193
    %v196 = vsinq.f32.pop %v193
    %vm197 = vweird.f32 %v104
    %v198 = vadd.s32 %v194, 3
    %v199 = vand.u32 %v198, 3
    %vm200 = vcmp.lt.s32.totalorder %v199, 2
    %vm201 = vcmp.eq.s32.totalorder %v199, 0
    %v202 = vxor.u32 %v196, 2147483648
    %v203 = vsel %vm201, %v195, %v202
    %vm204 = vcmp.eq.s32.totalorder %v199, 2
    %v205 = vxor.u32 %v195, 2147483648
    %v206 = vsel %vm204, %v205, %v196
    %v207 = vsel %vm200, %v203, %v206
    %v208 = vsel %vm197, nan, %v207
    %v209 = vlaneseq
    %v210 = vshrl.u32 %v209, 7
    %v211 = vsub.s32 4, %v210
    %v212 = vrot.slane %v84, %v211
    %v213 = vmul.f32 %v212, %v208
    %v214 = vadd.f32 %v94, %v213
    %v215 = vld [vmem:[#allocation8] sm:$0xff]
    %v216 = vld [vmem:[#allocation8 + $0x8] sm:$0xff]
    %v217 = vld [vmem:[#allocation8 + $0x10] sm:$0xff]
    %v218 = vld [vmem:[#allocation8 + $0x18] sm:$0xff]
    %v219 = vld [vmem:[#allocation8 + $0x20] sm:$0xff]
    %v220 = vld [vmem:[#allocation8 + $0x28] sm:$0xff]
    %v221 = vld [vmem:[#allocation8 + $0x30] sm:$0xff]
    %v222 = vld [vmem:[#allocation8 + $0x38] sm:$0xff]
    %v223 = vld [vmem:[#allocation8 + $0x40] sm:$0xff]
    %v224 = vld [vmem:[#allocation8 + $0x48] sm:$0xff]
    %v225 = vld [vmem:[#allocation8 + $0x50] sm:$0xff]
    %v226 = vld [vmem:[#allocation8 + $0x58] sm:$0xff]
    %v227 = vld [vmem:[#allocation8 + $0x60] sm:$0xff]
    %v228 = vld [vmem:[#allocation8 + $0x68] sm:$0xff]
    %v229 = vld [vmem:[#allocation8 + $0x70] sm:$0xff]
    %v230 = vld [vmem:[#allocation8 + $0x78] sm:$0xff]
    %231 = vmatprep.subr.mxu0 0.0
    %232 = vmatpush1.msra.mxu0 %v230
    %233 = vmatprep.subr.mxu0 0.0
    %234 = vmatpush1.msra.mxu0 %v229
    %235 = vmatprep.subr.mxu0 0.0
    %236 = vmatpush1.msra.mxu0 %v228
    %237 = vmatprep.subr.mxu0 0.0
    %238 = vmatpush1.msra.mxu0 %v227
    %239 = vmatprep.subr.mxu0 0.0
    %240 = vmatpush1.msra.mxu0 %v226
    %241 = vmatprep.subr.mxu0 0.0
    %242 = vmatpush1.msra.mxu0 %v225
    %243 = vmatprep.subr.mxu0 0.0
    %244 = vmatpush1.msra.mxu0 %v224
    %245 = vmatprep.subr.mxu0 0.0
    %246 = vmatpush1.msra.mxu0 %v223
    %247 = vmatprep.subr.mxu0 0.0
    %248 = vmatpush1.msra.mxu0 %v222
    %249 = vmatprep.subr.mxu0 0.0
    %250 = vmatpush1.msra.mxu0 %v221
    %251 = vmatprep.subr.mxu0 0.0
    %252 = vmatpush1.msra.mxu0 %v220
    %253 = vmatprep.subr.mxu0 0.0
    %254 = vmatpush1.msra.mxu0 %v219
    %255 = vmatprep.subr.mxu0 0.0
    %256 = vmatpush1.msra.mxu0 %v218
    %257 = vmatprep.subr.mxu0 0.0
    %258 = vmatpush1.msra.mxu0 %v217
    %259 = vmatprep.subr.mxu0 0.0
    %260 = vmatpush1.msra.mxu0 %v216
    %261 = vmatprep.subr.mxu0 0.0
    %262 = vmatpush1.msra.mxu0 %v215
    %263 = vmatprep.subr.mxu0 0.0
    %264 = vmatpush2.msra.mxu0 0.0
    %265 = vmatprep.subr.mxu0 0.0
    %266 = vmatpush2.msra.mxu0 0.0
    %267 = vmatprep.subr.mxu0 0.0
    %268 = vmatpush2.msra.mxu0 0.0
    %269 = vmatprep.subr.mxu0 0.0
    %270 = vmatpush2.msra.mxu0 0.0
    %271 = vmatprep.subr.mxu0 0.0
    %272 = vmatpush2.msra.mxu0 0.0
    %273 = vmatprep.subr.mxu0 0.0
    %274 = vmatpush2.msra.mxu0 0.0
    %275 = vmatprep.subr.mxu0 0.0
    %276 = vmatpush2.msra.mxu0 0.0
    %277 = vmatprep.subr.mxu0 0.0
    %278 = vmatpush2.msra.mxu0 0.0
    %279 = vmatprep.subr.mxu0 0.0
    %280 = vmatpush2.msra.mxu0 0.0
    %281 = vmatprep.subr.mxu0 0.0
    %282 = vmatpush2.msra.mxu0 0.0
    %283 = vmatprep.subr.mxu0 0.0
    %284 = vmatpush2.msra.mxu0 0.0
    %285 = vmatprep.subr.mxu0 0.0
    %286 = vmatpush2.msra.mxu0 0.0
    %287 = vmatprep.subr.mxu0 0.0
    %288 = vmatpush2.msra.mxu0 0.0
    %289 = vmatprep.subr.mxu0 0.0
    %290 = vmatpush2.msra.mxu0 0.0
    %291 = vmatprep.subr.mxu0 0.0
    %292 = vmatpush2.msra.mxu0 0.0
    %293 = vmatprep.subr.mxu0 0.0
    %294 = vmatpush2.msra.mxu0 0.0
    %295 = vmatprep.mubr.f32.mxu0 0.0
    %296 = vmatmul.mubr.f32.gmra.mxu0 %v214
    %v297 = vpop.f32.mrf.mxu0
    %v298 = vadd.f32 0.0, %v297
    %v299 = vpop.f32.mrf.mxu0
    %300 = vdwg.mxu0
    %v301 = vld [vmem:[#allocation7] sm:$0xff]
    %v302 = vlaneseq
    %v303 = vshrl.u32 %v302, 7
    %v304 = vsub.s32 0, %v303
    %v305 = vrot.slane %v301, %v304
    %v306 = vmul.f32 %v305, %v298
    %v307 = vlaneseq
    %v308 = vshrl.u32 %v307, 7
    %v309 = vsub.s32 1, %v308
    %v310 = vrot.slane %v301, %v309
    %v311 = vadd.f32 %v306, %v310
    %v312 = vlaneseq
    %v313 = vshrl.u32 %v312, 7
    %v314 = vsub.s32 2, %v313
    %v315 = vrot.slane %v301, %v314
    %v316 = vmul.f32 %v315, %v298
    %v317 = vlaneseq
    %v318 = vshrl.u32 %v317, 7
    %v319 = vsub.s32 3, %v318
    %v320 = vrot.slane %v301, %v319
    %v321 = vadd.f32 %v316, %v320
    %v322 = vand.u32 2147483647, %v321
    %vm323 = vcmp.le.f32.partialorder %v322, 0.7853982
    %vm324 = vcmp.lt.s32.totalorder %v321, 0
    %v325 = vand.u32 %v321, 2139095040
    %v326 = vshrl.u32 %v325, 23
    %v327 = vsub.s32 %v326, 127
    %v328 = vand.u32 2147483647, %v321
    %v329 = vand.u32 %v328, 8388607
    %v330 = vor.u32 %v329, 8388608
    %v331 = vsub.s32 0, %v330
    %v332 = vadd.s32 %v327, 1
    %vm333 = vcmp.gt.s32.totalorder %v332, 0
    %v334 = vsel %vm333, %v332, 0
    %v335 = vshrl.u32 %v334, 5
    %v336 = vand.u32 %v334, 31
    %v337 = vsub.s32 32, %v336
    %v338 = vshrl.u32 683565275, %v337
    %v339 = vshll.u32 683565275, %v336
    %v340 = vshrl.u32 2475754826, %v337
    %v341 = vor.u32 %v339, %v340
    %v342 = vshll.u32 2475754826, %v336
    %v343 = vshrl.u32 2131351028, %v337
    %v344 = vor.u32 %v342, %v343
    %v345 = vshll.u32 2131351028, %v336
    %v346 = vshrl.u32 2102212464, %v337
    %v347 = vor.u32 %v345, %v346
    %v348 = vshll.u32 2102212464, %v336
    %v349 = vshrl.u32 920167782, %v337
    %v350 = vor.u32 %v348, %v349
    %v351 = vshll.u32 920167782, %v336
    %v352 = vshrl.u32 1326507024, %v337
    %v353 = vor.u32 %v351, %v352
    %vm354 = vcmp.lt.s32.totalorder %v335, 1
    %vm355 = vcmp.lt.s32.totalorder %v335, 2
    %vm356 = vcmp.lt.s32.totalorder %v335, 3
    %vm357 = vcmp.lt.s32.totalorder %v335, 4
    %v358 = vsel %vm354, %v338, %v341
    %v359 = vsel %vm357, %v347, 2102212464
    %v360 = vsel %vm356, %v344, %v359
    %v361 = vsel %vm355, %v358, %v360
    %v362 = vsel %vm354, %v341, %v344
    %v363 = vsel %vm357, %v350, 920167782
    %v364 = vsel %vm356, %v347, %v363
    %v365 = vsel %vm355, %v362, %v364
    %v366 = vsel %vm354, %v344, %v347
    %v367 = vsel %vm357, %v353, 1326507024
    %v368 = vsel %vm356, %v350, %v367
    %v369 = vsel %vm355, %v366, %v368
    %v370 = vshll.u32 %v330, 8
    %v371 = vmul.u32.u64.compose %v370, %v369
    %v372 = vextract.low.u32 %v371
    %v373 = vextract.high.u32 %v371
    %v374 = vmul.u32.u64.compose %v370, %v365
    %v375 = vextract.low.u32 %v374
    %v376 = vextract.high.u32 %v374
    %v377 = vmul.u32 %v370, %v361
    %v378 = vadd.s32 %v373, %v375
    %vm379 = vc.u32 %v373, %v375
    %v380 = vadd.s32 %v376, 1
    %v381 = vsel %vm379, %v380, %v376
    %v382 = vadd.s32 %v377, %v381
    %v383 = vadd.s32 %v382, 536870912
    %v384 = vshrl.u32 %v383, 30
    %v385 = vshll.u32 %v384, 30
    %v386 = vsub.s32 %v382, %v385
    %vm387 = vcmp.lt.s32.totalorder %v386, 0
    %v388 = vsub.s32 0, %v386
    %v389 = vsel %vm387, %v388, %v386
    %v390 = vclz %v389
    %v391 = vsub.s32 %v390, 2
    %vm392 = vcmp.gt.s32.totalorder 0, %v391
    %v393 = vsel %vm392, 0, %v391
    %v394 = vsub.s32 32, %v393
    %v395 = vshll.u32 %v386, %v393
    %v396 = vshrl.u32 %v378, %v394
    %v397 = vor.u32 %v395, %v396
    %v398 = vsub.s32 4294967266, %v393
    %v399 = vadd.s32 %v398, 127
    %v400 = vshll.u32 %v399, 23
    %v401 = vor.u32 4788187, %v400
    %v402 = vand.u32 2147483647, %v401
    %v404 = vcvt.s32.f32 %v397
    %v405 = vmul.f32 %v404, %v402
    %v406 = vxor.u32 %v405, 2147483648
    %v407 = vsel %vm324, %v406, %v405
    %v408 = vsub.s32 4, %v384
    %v409 = vsel %vm324, %v408, %v384
    %v410 = vsel %vm323, %v321, %v407
    %v411 = vsel %vm323, 0, %v409
    %v412 = vcosq.f32.pop %v410
    %v413 = vsinq.f32.pop %v410
    %vm414 = vweird.f32 %v321
    %v415 = vadd.s32 %v411, 3
    %v416 = vand.u32 %v415, 3
    %vm417 = vcmp.lt.s32.totalorder %v416, 2
    %vm418 = vcmp.eq.s32.totalorder %v416, 0
    %v419 = vxor.u32 %v413, 2147483648
    %v420 = vsel %vm418, %v412, %v419
    %vm421 = vcmp.eq.s32.totalorder %v416, 2
    %v422 = vxor.u32 %v412, 2147483648
    %v423 = vsel %vm421, %v422, %v413
    %v424 = vsel %vm417, %v420, %v423
    %v425 = vsel %vm414, nan, %v424
    %v426 = vlaneseq
    %v427 = vshrl.u32 %v426, 7
    %v428 = vsub.s32 4, %v427
    %v429 = vrot.slane %v301, %v428
    %v430 = vmul.f32 %v429, %v425
    %v431 = vadd.f32 %v311, %v430
    %v432 = vld [vmem:[#allocation10] sm:$0xff]
    %v433 = vld [vmem:[#allocation10 + $0x8] sm:$0xff]
    %v434 = vld [vmem:[#allocation10 + $0x10] sm:$0xff]
    %v435 = vld [vmem:[#allocation10 + $0x18] sm:$0xff]
    %v436 = vld [vmem:[#allocation10 + $0x20] sm:$0xff]
    %v437 = vld [vmem:[#allocation10 + $0x28] sm:$0xff]
    %v438 = vld [vmem:[#allocation10 + $0x30] sm:$0xff]
    %v439 = vld [vmem:[#allocation10 + $0x38] sm:$0xff]
    %v440 = vld [vmem:[#allocation10 + $0x40] sm:$0xff]
    %v441 = vld [vmem:[#allocation10 + $0x48] sm:$0xff]
    %v442 = vld [vmem:[#allocation10 + $0x50] sm:$0xff]
    %v443 = vld [vmem:[#allocation10 + $0x58] sm:$0xff]
    %v444 = vld [vmem:[#allocation10 + $0x60] sm:$0xff]
    %v445 = vld [vmem:[#allocation10 + $0x68] sm:$0xff]
    %v446 = vld [vmem:[#allocation10 + $0x70] sm:$0xff]
    %v447 = vld [vmem:[#allocation10 + $0x78] sm:$0xff]
    %448 = vmatprep.subr.mxu0 0.0
    %449 = vmatpush1.msra.mxu0 %v447
    %450 = vmatprep.subr.mxu0 0.0
    %451 = vmatpush1.msra.mxu0 %v446
    %452 = vmatprep.subr.mxu0 0.0
    %453 = vmatpush1.msra.mxu0 %v445
    %454 = vmatprep.subr.mxu0 0.0
    %455 = vmatpush1.msra.mxu0 %v444
    %456 = vmatprep.subr.mxu0 0.0
    %457 = vmatpush1.msra.mxu0 %v443
    %458 = vmatprep.subr.mxu0 0.0
    %459 = vmatpush1.msra.mxu0 %v442
    %460 = vmatprep.subr.mxu0 0.0
    %461 = vmatpush1.msra.mxu0 %v441
    %462 = vmatprep.subr.mxu0 0.0
    %463 = vmatpush1.msra.mxu0 %v440
    %464 = vmatprep.subr.mxu0 0.0
    %465 = vmatpush1.msra.mxu0 %v439
    %466 = vmatprep.subr.mxu0 0.0
    %467 = vmatpush1.msra.mxu0 %v438
    %468 = vmatprep.subr.mxu0 0.0
    %469 = vmatpush1.msra.mxu0 %v437
    %470 = vmatprep.subr.mxu0 0.0
    %471 = vmatpush1.msra.mxu0 %v436
    %472 = vmatprep.subr.mxu0 0.0
    %473 = vmatpush1.msra.mxu0 %v435
    %474 = vmatprep.subr.mxu0 0.0
    %475 = vmatpush1.msra.mxu0 %v434
    %476 = vmatprep.subr.mxu0 0.0
    %477 = vmatpush1.msra.mxu0 %v433
    %478 = vmatprep.subr.mxu0 0.0
    %479 = vmatpush1.msra.mxu0 %v432
    %480 = vmatprep.subr.mxu0 0.0
    %481 = vmatpush2.msra.mxu0 0.0
    %482 = vmatprep.subr.mxu0 0.0
    %483 = vmatpush2.msra.mxu0 0.0
    %484 = vmatprep.subr.mxu0 0.0
    %485 = vmatpush2.msra.mxu0 0.0
    %486 = vmatprep.subr.mxu0 0.0
    %487 = vmatpush2.msra.mxu0 0.0
    %488 = vmatprep.subr.mxu0 0.0
    %489 = vmatpush2.msra.mxu0 0.0
    %490 = vmatprep.subr.mxu0 0.0
    %491 = vmatpush2.msra.mxu0 0.0
    %492 = vmatprep.subr.mxu0 0.0
    %493 = vmatpush2.msra.mxu0 0.0
    %494 = vmatprep.subr.mxu0 0.0
    %495 = vmatpush2.msra.mxu0 0.0
    %496 = vmatprep.subr.mxu0 0.0
    %497 = vmatpush2.msra.mxu0 0.0
    %498 = vmatprep.subr.mxu0 0.0
    %499 = vmatpush2.msra.mxu0 0.0
    %500 = vmatprep.subr.mxu0 0.0
    %501 = vmatpush2.msra.mxu0 0.0
    %502 = vmatprep.subr.mxu0 0.0
    %503 = vmatpush2.msra.mxu0 0.0
    %504 = vmatprep.subr.mxu0 0.0
    %505 = vmatpush2.msra.mxu0 0.0
    %506 = vmatprep.subr.mxu0 0.0
    %507 = vmatpush2.msra.mxu0 0.0
    %508 = vmatprep.subr.mxu0 0.0
    %509 = vmatpush2.msra.mxu0 0.0
    %510 = vmatprep.subr.mxu0 0.0
    %511 = vmatpush2.msra.mxu0 0.0
    %512 = vmatprep.mubr.f32.mxu0 0.0
    %513 = vmatmul.mubr.f32.gmra.mxu0 %v431
    %v514 = vpop.f32.mrf.mxu0
    %v515 = vadd.f32 0.0, %v514
    %v516 = vpop.f32.mrf.mxu0
    %517 = vdwg.mxu0
    %518 = vst [vmem:[#allocation11] sm:$0xff] %v515
    // Predicated region
    $region42: #{tpu_custom_call.1} parent=1 // pred_check
      _
    $region43: #{tpu_custom_call.1} parent=1 // pred_check_branch
      %520 = sbr.rel (0) target = $region45
    $region44: #{tpu_custom_call.1} parent=1 // pred_region
      %s522 = ssub.s32 128, 128
      %523 = vsyncadd [#allocation4], %s522
      %s525 = sshll.u32 [#allocation11], 4
      %s526 = int_to_ptr.vmem [resolvable:$true] %s525
      %528 = dma.vmem_to_hbm [thread:$0]  %s526, 128, %s5, [#allocation4]
    $region45: #{tpu_custom_call.1} parent=1 // pred_fallthru
      _
    // Predicated region
    $region46: #{tpu_custom_call.1} parent=1 // pred_check
      _
    $region47: #{tpu_custom_call.1} parent=1 // pred_check_branch
      %530 = sbr.rel (0) target = $region49
    $region48: #{tpu_custom_call.1} parent=1 // pred_region
      %531 = dma.done [#allocation4], 128
    $region49: #{tpu_custom_call.1} parent=1 // pred_fallthru
      _
    %532 = vsyncpa [#allocation3], 1
    %533 = vsyncpa [#allocation6], 1
    %534 = vsyncpa [#allocation9], 1
    %535 = vsyncpa [#allocation4], 1

</llo_original>
